<compile_context>
chip_gen: v7x
topology: tpu7x:2x2x1
jax: 0.10.0
libtpu: 0.0.40
codegen_flags: <defaults>
</compile_context>

<pallas_src>
import math
import functools

import jax
import jax.numpy as jnp
import numpy as np
from jax.experimental import pallas as pl
from jax.experimental.pallas import tpu as pltpu


# ---------------------------------------------------------------------------
# Tiled Linear: y = x @ W + b, grid = (M/tm, N/tn, K/tk), K innermost (reduction).
# ---------------------------------------------------------------------------
def _linear_kernel(x_ref, w_ref, b_ref, o_ref, acc_ref):
    k = pl.program_id(2)

    @pl.when(k == 0)
    def _():
        acc_ref[...] = jnp.zeros_like(acc_ref)

    # bf16 MXU operands, f32 accumulation (weights arrive pre-cast to bf16).
    acc_ref[...] += jnp.dot(
        x_ref[...].astype(jnp.bfloat16),
        w_ref[...].astype(jnp.bfloat16),
        preferred_element_type=jnp.float32)

    @pl.when(k == pl.num_programs(2) - 1)
    def _():
        o_ref[...] = (acc_ref[...] + b_ref[...]).astype(o_ref.dtype)


def _linear(x2, w, b, *, out_dtype=None, tm=128, tn=128, tk=128):
    """x2: (M, K), w: (K, N) (any float dtype), b: (N,) f32 -> (M, N)."""
    M, K = x2.shape
    Kw, N = w.shape
    assert K == Kw
    out_dtype = x2.dtype if out_dtype is None else out_dtype
    tm, tn, tk = min(tm, M), min(tn, N), min(tk, K)
    assert M % tm == 0 and N % tn == 0 and K % tk == 0
    b2 = b.reshape(1, N).astype(jnp.float32)
    grid = (M // tm, N // tn, K // tk)
    return pl.pallas_call(
        _linear_kernel,
        out_shape=jax.ShapeDtypeStruct((M, N), out_dtype),
        grid_spec=pltpu.PrefetchScalarGridSpec(
            num_scalar_prefetch=0,
            grid=grid,
            in_specs=[
                pl.BlockSpec((tm, tk), lambda i, j, k: (i, k)),
                pl.BlockSpec((tk, tn), lambda i, j, k: (k, j)),
                pl.BlockSpec((1, tn), lambda i, j, k: (0, j)),
            ],
            out_specs=pl.BlockSpec((tm, tn), lambda i, j, k: (i, j)),
            scratch_shapes=[pltpu.VMEM((tm, tn), jnp.float32)],
        ),
        compiler_params=pltpu.CompilerParams(
            dimension_semantics=("parallel", "parallel", "arbitrary")),
    )(x2, w, b2)


# ---------------------------------------------------------------------------
# Flash-style attention over a fused (pre-scaled) qkv tensor, heads via static
# column slices, out_proj fused into the finalize step.
# ---------------------------------------------------------------------------
# TODO(synk): the optional mask=True causal branch of the PyTorch forward is not
# implemented (the module default, mask=False, is what this kernel computes).
def _flash_attn_kernel(q_ref, k_ref, v_ref, wout_ref, bout_ref, o_ref,
                       m_ref, l_ref, acc_ref, *, n_heads, d_head):
    ki = pl.program_id(2)

    @pl.when(ki == 0)
    def _():
        m_ref[...] = jnp.full_like(m_ref, -jnp.inf)
        l_ref[...] = jnp.zeros_like(l_ref)
        acc_ref[...] = jnp.zeros_like(acc_ref)

    q = q_ref[0]        # (tq,  d_emb) bf16, 1/sqrt(d_head) already folded in
    k = k_ref[0]        # (tkv, d_emb) bf16
    v = v_ref[0]        # (tkv, d_emb) bf16

    # Static column slices per head: no reshape / transpose(1,0,2) XLU traffic.
    for h in range(n_heads):
        cols = slice(h * d_head, (h + 1) * d_head)
        qh, kh, vh = q[:, cols], k[:, cols], v[:, cols]

        s = jnp.einsum('qd,kd->qk', qh, kh,
                       preferred_element_type=jnp.float32)          # (tq, tkv)

        m_prev = m_ref[h]                                            # (tq, 1)
        m_new = jnp.maximum(m_prev, jnp.max(s, axis=-1, keepdims=True))
        alpha = jnp.exp(m_prev - m_new)
        p = jnp.exp(s - m_new)
        l_ref[h] = alpha * l_ref[h] + jnp.sum(p, axis=-1, keepdims=True)
        acc_ref[h] = alpha * acc_ref[h] + jnp.dot(
            p.astype(jnp.bfloat16), vh, preferred_element_type=jnp.float32)
        m_ref[h] = m_new

    @pl.when(ki == pl.num_programs(2) - 1)
    def _():
        # Normalize (EUP approx reciprocal), merge heads into a lane-dense
        # (tq, d_emb) tile and apply the fused out_proj on the MXU.
        outs = [acc_ref[h] * pl.reciprocal(l_ref[h], approx=True)
                for h in range(n_heads)]
        att = jnp.concatenate(outs, axis=-1).astype(jnp.bfloat16)    # (tq, d_emb)
        o_ref[0] = (jnp.dot(att, wout_ref[...],
                            preferred_element_type=jnp.float32)
                    + bout_ref[...]).astype(o_ref.dtype)


def _flash_attention_outproj(qkv, w_out, b_out, *, n_heads, out_dtype,
                             q_tile=128, kv_tile=128):
    """qkv: (bs, seq, 3*d_emb) bf16 (q pre-scaled) -> out_proj(attention) output."""
    bs, seq, three_d = qkv.shape
    d_emb = three_d // 3
    assert d_emb % n_heads == 0
    d_head = d_emb // n_heads
    tq, tkv = min(q_tile, seq), min(kv_tile, seq)
    assert seq % tq == 0 and seq % tkv == 0
    assert d_emb % 128 == 0, "column-sliced q/k/v blocks require d_emb % 128 == 0"

    b_out2 = b_out.reshape(1, d_emb).astype(jnp.float32)
    kernel = functools.partial(_flash_attn_kernel, n_heads=n_heads, d_head=d_head)
    grid = (bs, seq // tq, seq // tkv)
    return pl.pallas_call(
        kernel,
        out_shape=jax.ShapeDtypeStruct((bs, seq, d_emb), out_dtype),
        grid_spec=pltpu.PrefetchScalarGridSpec(
            num_scalar_prefetch=0,
            grid=grid,
            in_specs=[
                # q / k / v are column blocks 0 / 1 / 2 of the same qkv array;
                # Pallas only DMAs the needed (tile, d_emb) window per step.
                pl.BlockSpec((1, tq, d_emb), lambda b, qi, ki: (b, qi, 0)),
                pl.BlockSpec((1, tkv, d_emb), lambda b, qi, ki: (b, ki, 1)),
                pl.BlockSpec((1, tkv, d_emb), lambda b, qi, ki: (b, ki, 2)),
                # out_proj weight/bias: constant blocks, DMA'd once and resident.
                pl.BlockSpec((d_emb, d_emb), lambda b, qi, ki: (0, 0)),
                pl.BlockSpec((1, d_emb), lambda b, qi, ki: (0, 0)),
            ],
            out_specs=pl.BlockSpec((1, tq, d_emb), lambda b, qi, ki: (b, qi, 0)),
            scratch_shapes=[
                pltpu.VMEM((n_heads, tq, 1), jnp.float32),       # running max m
                pltpu.VMEM((n_heads, tq, 1), jnp.float32),       # running sum l
                pltpu.VMEM((n_heads, tq, d_head), jnp.float32),  # output accum
            ],
        ),
        compiler_params=pltpu.CompilerParams(
            dimension_semantics=("parallel", "parallel", "arbitrary")),
    )(qkv, qkv, qkv, w_out, b_out2)


# ---------------------------------------------------------------------------
# Full module forward.
# ---------------------------------------------------------------------------
def self_attention(x, w_in, b_in, w_out, b_out, *, n_heads):
    """x: (bs, seq, d_emb) f32. w_in: (d_emb, 3*d_emb), b_in: (3*d_emb,),
    w_out: (d_emb, d_emb), b_out: (d_emb,)."""
    bs, seq, d_emb = x.shape
    d_head = d_emb // n_heads
    scale = 1.0 / math.sqrt(d_head)

    # Fold the softmax scale into the q third of the in-proj params (exact):
    # (q*scale) @ k^T == (q @ k^T) * scale.
    col_scale = jnp.concatenate([
        jnp.full((d_emb,), scale, dtype=jnp.float32),
        jnp.ones((2 * d_emb,), dtype=jnp.float32)])
    w_in_s = (w_in.astype(jnp.float32) * col_scale).astype(jnp.bfloat16)
    b_in_s = b_in.astype(jnp.float32) * col_scale

    qkv = _linear(x.reshape(bs * seq, d_emb), w_in_s, b_in_s,
                  out_dtype=jnp.bfloat16)                           # (bs*seq, 3d)
    out = _flash_attention_outproj(qkv.reshape(bs, seq, 3 * d_emb),
                                   w_out.astype(jnp.bfloat16), b_out,
                                   n_heads=n_heads, out_dtype=x.dtype)
    return out


def _reference(x, w_in, b_in, w_out, b_out, n_heads):
    """Pure-JAX reference mirroring the PyTorch forward (mask=False)."""
    bs, seq, d_emb = x.shape
    d_head = d_emb // n_heads
    qkv = jnp.einsum('bse,ef->bsf', x, w_in) + b_in
    q, k, v = jnp.split(qkv, 3, axis=-1)
    def heads(t):
        return t.reshape(bs, seq, n_heads, d_head).transpose(0, 2, 1, 3)
    q, k, v = heads(q), heads(k), heads(v)
    w = jnp.einsum('bhqd,bhkd->bhqk', q, k) / math.sqrt(d_head)
    w = jax.nn.softmax(w, axis=-1)
    att = jnp.einsum('bhqk,bhkd->bhqd', w, v)
    att = att.transpose(0, 2, 1, 3).reshape(bs, seq, d_emb)
    return jnp.einsum('bse,ef->bsf', att, w_out) + b_out


if __name__ == "__main__":
    # Small but TPU-friendly shapes: 128-aligned last dims (lane-dense stores,
    # (8,128)-aligned blocks), multiple kv tiles to exercise the online softmax.
    bs, seq, d_emb, n_heads = 2, 256, 128, 4

    key = jax.random.PRNGKey(0)
    kx, k1, k2, k3, k4 = jax.random.split(key, 5)

    x = jax.random.normal(kx, (bs, seq, d_emb), dtype=jnp.float32)

    # PyTorch Linear stores (out, in); we keep the (in, out) transposed form so
    # the kernels compute x @ W + b directly.
    scale_in = 1.0 / math.sqrt(d_emb)
    w_in = jax.random.uniform(k1, (d_emb, 3 * d_emb), jnp.float32,
                              -scale_in, scale_in)
    b_in = jax.random.uniform(k2, (3 * d_emb,), jnp.float32,
                              -scale_in, scale_in)
    w_out = jax.random.uniform(k3, (d_emb, d_emb), jnp.float32,
                               -scale_in, scale_in)
    b_out = jax.random.uniform(k4, (d_emb,), jnp.float32,
                               -scale_in, scale_in)

    out = self_attention(x, w_in, b_in, w_out, b_out, n_heads=n_heads)
    out = jax.block_until_ready(out)

    ref = _reference(x, w_in, b_in, w_out, b_out, n_heads)
    # bf16 MXU operands with f32 accumulation -> relaxed tolerance vs f32 ref.
    np.testing.assert_allclose(np.asarray(out), np.asarray(ref),
                               rtol=3e-2, atol=3e-2)

    print("KERNEL_OK")
</pallas_src>

<mosaic_0001>
module attributes {stable_mosaic.version = 11 : i64} {
  func.func @_linear_kernel(%arg0: i32, %arg1: i32, %arg2: i32, %arg3: memref<128x128xf32, #tpu.memory_space<vmem>>, %arg4: memref<128x128xbf16, #tpu.memory_space<vmem>>, %arg5: memref<1x128xf32, #tpu.memory_space<vmem>>, %arg6: memref<128x128xbf16, #tpu.memory_space<vmem>>, %arg7: memref<128x128xf32, #tpu.memory_space<vmem>>) attributes {dimension_semantics = [#tpu.dimension_semantics<parallel>, #tpu.dimension_semantics<parallel>, #tpu.dimension_semantics<arbitrary>], iteration_bounds = array<i64: 4, 3, 1>, scalar_prefetch = 0 : i64, scratch_operands = 1 : i64, tpu.core_type = #tpu.core_type<tc>, window_params = [{transform_indices = @transform_0, window_bounds = array<i64: 128, 128>}, {transform_indices = @transform_1, window_bounds = array<i64: 128, 128>}, {transform_indices = @transform_2, window_bounds = array<i64: 1, 128>}, {transform_indices = @transform_3, window_bounds = array<i64: 128, 128>}]} {
    %c0_i32 = arith.constant 0 : i32
    %0 = arith.cmpi eq, %arg2, %c0_i32 : i32
    %1 = arith.extui %0 : i1 to i32
    %c0_i32_0 = arith.constant 0 : i32
    %2 = arith.cmpi ne, %1, %c0_i32_0 : i32
    scf.if %2 {
      %cst_10 = arith.constant 0.000000e+00 : f32
      %13 = vector.broadcast %cst_10 : f32 to vector<128x128xf32>
      %c0_11 = arith.constant 0 : index
      %c0_12 = arith.constant 0 : index
      %14 = vector.load %arg7[%c0_11, %c0_12] : memref<128x128xf32, #tpu.memory_space<vmem>>, vector<128x128xf32>
      tpu.vector_store %arg7[%c0_11, %c0_12], %13 {strides = array<i32>} : memref<128x128xf32, #tpu.memory_space<vmem>>, vector<128x128xf32>,
    } else {
    }
    %c0 = arith.constant 0 : index
    %c0_1 = arith.constant 0 : index
    %3 = vector.load %arg7[%c0, %c0_1] : memref<128x128xf32, #tpu.memory_space<vmem>>, vector<128x128xf32>
    %c0_2 = arith.constant 0 : index
    %c0_3 = arith.constant 0 : index
    %4 = vector.load %arg3[%c0_2, %c0_3] : memref<128x128xf32, #tpu.memory_space<vmem>>, vector<128x128xf32>
    %5 = arith.truncf %4 : vector<128x128xf32> to vector<128x128xbf16>
    %c0_4 = arith.constant 0 : index
    %c0_5 = arith.constant 0 : index
    %6 = vector.load %arg4[%c0_4, %c0_5] : memref<128x128xbf16, #tpu.memory_space<vmem>>, vector<128x128xbf16>
    %cst = arith.constant dense<0.000000e+00> : vector<128x128xf32>
    %7 = tpu.matmul %5, %6, %cst {dimension_numbers = #tpu.dot_dimension_numbers<[1], [0], [0], [1], [0, 0, 1, 1], [], []>} : vector<128x128xbf16>, vector<128x128xbf16>, vector<128x128xf32> -> vector<128x128xf32>
    %8 = arith.addf %3, %7 : vector<128x128xf32>
    %c0_6 = arith.constant 0 : index
    %c0_7 = arith.constant 0 : index
    %9 = vector.load %arg7[%c0_6, %c0_7] : memref<128x128xf32, #tpu.memory_space<vmem>>, vector<128x128xf32>
    tpu.vector_store %arg7[%c0_6, %c0_7], %8 {strides = array<i32>} : memref<128x128xf32, #tpu.memory_space<vmem>>, vector<128x128xf32>,
    %c0_i32_8 = arith.constant 0 : i32
    %10 = arith.cmpi eq, %arg2, %c0_i32_8 : i32
    %11 = arith.extui %10 : i1 to i32
    %c0_i32_9 = arith.constant 0 : i32
    %12 = arith.cmpi ne, %11, %c0_i32_9 : i32
    scf.if %12 {
      %c0_10 = arith.constant 0 : index
      %c0_11 = arith.constant 0 : index
      %13 = vector.load %arg7[%c0_10, %c0_11] : memref<128x128xf32, #tpu.memory_space<vmem>>, vector<128x128xf32>
      %c0_12 = arith.constant 0 : index
      %c0_13 = arith.constant 0 : index
      %14 = vector.load %arg5[%c0_12, %c0_13] : memref<1x128xf32, #tpu.memory_space<vmem>>, vector<1x128xf32>
      %15 = vector.broadcast %14 : vector<1x128xf32> to vector<128x128xf32>
      %16 = arith.addf %13, %15 : vector<128x128xf32>
      %17 = arith.truncf %16 : vector<128x128xf32> to vector<128x128xbf16>
      %c0_14 = arith.constant 0 : index
      %c0_15 = arith.constant 0 : index
      %18 = vector.load %arg6[%c0_14, %c0_15] : memref<128x128xbf16, #tpu.memory_space<vmem>>, vector<128x128xbf16>
      tpu.vector_store %arg6[%c0_14, %c0_15], %17 {strides = array<i32>} : memref<128x128xbf16, #tpu.memory_space<vmem>>, vector<128x128xbf16>,
    } else {
    }
    return
  }
  func.func @transform_0(%arg0: i32, %arg1: i32, %arg2: i32) -> (i32, i32) {
    %c0_i32 = arith.constant 0 : i32
    return %arg0, %arg2 : i32, i32
  }
  func.func @transform_1(%arg0: i32, %arg1: i32, %arg2: i32) -> (i32, i32) {
    %c0_i32 = arith.constant 0 : i32
    return %arg2, %arg1 : i32, i32
  }
  func.func @transform_2(%arg0: i32, %arg1: i32, %arg2: i32) -> (i32, i32) {
    %c0_i32 = arith.constant 0 : i32
    %c0_i32_0 = arith.constant 0 : i32
    return %c0_i32, %arg1 : i32, i32
  }
  func.func @transform_3(%arg0: i32, %arg1: i32, %arg2: i32) -> (i32, i32) {
    %c0_i32 = arith.constant 0 : i32
    return %arg0, %arg1 : i32, i32
  }
}

</mosaic_0001>

<llo_original>
// kernel: tpu_custom_call.1
$region0: #{tpu_custom_call.1}
  #allocation0 [shape = 'u32[]', space=smem, size = 0x4, offset = 0x4, fixed_abs, tag = 'smem constant byte address 0x4 - core index']
  #allocation1 [shape = 'u32[144,128]{1,0:T(1,128)}', space=vmem, size = 0x12000, scoped, tag = 'internal scratch']
  #allocation2 [shape = 'f32[128,128]{1,0:T(8,128)}', space=vmem, size = 0x10000, scoped, tag = 'scratch operand']
  %s0 = inlined_call_operand.hbm [shape: f32[512,128], index: 0, kind: input, shape index: {}]
  %s1 = inlined_call_operand.hbm [shape: bf16[128,384], index: 1, kind: input, shape index: {}]
  %s2 = inlined_call_operand.vmem [shape: f32[1,384], index: 2, kind: input, shape index: {}]
  %s3 = inlined_call_operand.hbm [shape: bf16[512,384], index: 3, kind: output, shape index: {}]
  %s4 = sld [smem:[#allocation0]]
  $region61: #{tpu_custom_call.1} parent=0
    _
  %s6 = ssub.s32 1, %s4
  %s7 = scalar_select 0, %s6, %s4
  $region1: #{tpu_custom_call.1} parent=0
    #allocation3 [shape = 'u8[131072]{0}', space=vmem, size = 0x20000, scoped, tag = 'input window, operand 0']
    #allocation4 [shape = 's32[2]{0}', space=sflag, size = 0x8, scoped, tag = 'scoped memory for tpu_custom_call.1']
    #allocation5 [shape = 's32[2]{0}', space=sflag, size = 0x8, scoped, tag = 'scoped memory for tpu_custom_call.1']
    #allocation6 [shape = 'u8[65536]{0}', space=vmem, size = 0x10000, scoped, tag = 'input window, operand 1']
    #allocation7 [shape = 's32[2]{0}', space=sflag, size = 0x8, scoped, tag = 'scoped memory for tpu_custom_call.1']
    #allocation8 [shape = 'u8[65536]{0}', space=vmem, size = 0x10000, scoped, tag = 'output window, operand 0']
    %8 = vsyncpa [#allocation4], 0
    %s9 = scalar_lea.sflag [#allocation4], 1
    %10 = vsyncpa %s9, 0
    %11 = vsyncpa [#allocation7], 0
    %s12 = scalar_lea.sflag [#allocation7], 1
    %13 = vsyncpa %s12, 0
    %14 = vsyncpa [#allocation5], 0
    %s15 = scalar_lea.sflag [#allocation5], 1
    %16 = vsyncpa %s15, 0
    loop: start=0, step=1, limit=14
    $region2: #{tpu_custom_call.1} parent=1 // loop_pre_header
      _
    $region3: #{tpu_custom_call.1} parent=1 // loop_header
      %s18 = sphi 0, %s22
      %p19 = scmp.ge.s32.totalorder %s18, 14
      %s25 = sphi 0, %s44
      %s26 = sphi 0, %s40
      %s27 = sphi 0, %s36
      %s28 = sphi 0, %s25
      %s29 = sphi 0, %s26
      %s30 = sphi 0, %s27
      %s31 = sphi 0, %s28
      %s32 = sphi 0, %s29
      %s33 = sphi 0, %s30
      %s49 = sphi 0, %s51
      %s52 = sphi 0, %s49
      %s53 = sphi 0, %s52
      %s69 = sphi 0, %s53
      %s77 = sphi 0, %s79
      %s80 = sphi 0, %s77
      %s81 = sphi 0, %s80
      %s97 = sphi 0, %s81
      %s103 = sphi 0, %s105
      %s106 = sphi 0, %s103
      %s107 = sphi 0, %s106
      %s123 = sphi 0, %s107
      %s131 = sphi 0, %s133
      %s134 = sphi 0, %s131
      %s135 = sphi 0, %s134
      %s151 = sphi 0, %s135
    $region4: #{tpu_custom_call.1} parent=1 // loop_header_branch
      %21 = sbr.rel (%p19) target = $region8
    $region5: #{tpu_custom_call.1} parent=1 // loop_body
      %s23 = ssub.s32 %s18, 1
      %s24 = ssub.s32 %s18, 2
      %s34 = sadd.s32 1, %s27
      %p35 = scmp.ge.s32.totalorder %s34, 1
      %s36 = scalar_select %p35, 0, %s34
      %s37 = sadd.s32 1, %s26
      %s38 = scalar_select %p35, %s37, %s26
      %p39 = scmp.ge.s32.totalorder %s38, 3
      %s40 = scalar_select %p39, 0, %s38
      %s41 = sadd.s32 1, %s25
      %s42 = scalar_select %p39, %s41, %s25
      %p43 = scmp.ge.s32.totalorder %s42, 4
      %s44 = scalar_select %p43, 0, %s42
      %s45 = ssub.s32 %s25, %s44
      %s46 = ssub.s32 %s27, %s36
      %s47 = sor.u32 %s45, %s46
      %p48 = scmp.eq.s32.totalorder %s47, 0
      %s50 = sadd.s32 %s49, 1
      %s51 = scalar_select %p48, %s49, %s50
      %p54 = pneg %p48
      %p55 = scmp.eq.s32.totalorder %s18, 11
      %p56 = por %p54, %p55
      %p57 = scmp.ne.s32.totalorder %s49, %s52
      %p58 = scmp.eq.s32.totalorder %s18, 0
      %p59 = por %p57, %p58
      %p60 = scmp.ne.s32.totalorder %s49, %s52
      %p61 = scmp.eq.s32.totalorder %s23, 11
      %p62 = por %p60, %p61
      %p63 = scmp.ne.s32.totalorder %s52, %s53
      %p64 = scmp.eq.s32.totalorder %s23, 0
      %p65 = por %p63, %p64
      %p66 = scmp.ne.s32.totalorder %s52, %s53
      %p67 = scmp.eq.s32.totalorder %s24, 11
      %p68 = por %p66, %p67
      %p70 = scmp.ne.s32.totalorder %s53, %s69
      %p71 = scmp.eq.s32.totalorder %s24, 0
      %p72 = por %p70, %p71
      %s73 = ssub.s32 %s27, %s36
      %s74 = ssub.s32 %s26, %s40
      %s75 = sor.u32 %s73, %s74
      %p76 = scmp.eq.s32.totalorder %s75, 0
      %s78 = sadd.s32 %s77, 1
      %s79 = scalar_select %p76, %s77, %s78
      %p82 = pneg %p76
      %p83 = scmp.eq.s32.totalorder %s18, 11
      %p84 = por %p82, %p83
      %p85 = scmp.ne.s32.totalorder %s77, %s80
      %p86 = scmp.eq.s32.totalorder %s18, 0
      %p87 = por %p85, %p86
      %p88 = scmp.ne.s32.totalorder %s77, %s80
      %p89 = scmp.eq.s32.totalorder %s23, 11
      %p90 = por %p88, %p89
      %p91 = scmp.ne.s32.totalorder %s80, %s81
      %p92 = scmp.eq.s32.totalorder %s23, 0
      %p93 = por %p91, %p92
      %p94 = scmp.ne.s32.totalorder %s80, %s81
      %p95 = scmp.eq.s32.totalorder %s24, 11
      %p96 = por %p94, %p95
      %p98 = scmp.ne.s32.totalorder %s81, %s97
      %p99 = scmp.eq.s32.totalorder %s24, 0
      %p100 = por %p98, %p99
      %s101 = ssub.s32 %s26, %s40
      %p102 = scmp.eq.s32.totalorder %s101, 0
      %s104 = sadd.s32 %s103, 1
      %s105 = scalar_select %p102, %s103, %s104
      %p108 = pneg %p102
      %p109 = scmp.eq.s32.totalorder %s18, 11
      %p110 = por %p108, %p109
      %p111 = scmp.ne.s32.totalorder %s103, %s106
      %p112 = scmp.eq.s32.totalorder %s18, 0
      %p113 = por %p111, %p112
      %p114 = scmp.ne.s32.totalorder %s103, %s106
      %p115 = scmp.eq.s32.totalorder %s23, 11
      %p116 = por %p114, %p115
      %p117 = scmp.ne.s32.totalorder %s106, %s107
      %p118 = scmp.eq.s32.totalorder %s23, 0
      %p119 = por %p117, %p118
      %p120 = scmp.ne.s32.totalorder %s106, %s107
      %p121 = scmp.eq.s32.totalorder %s24, 11
      %p122 = por %p120, %p121
      %p124 = scmp.ne.s32.totalorder %s107, %s123
      %p125 = scmp.eq.s32.totalorder %s24, 0
      %p126 = por %p124, %p125
      %s127 = ssub.s32 %s25, %s44
      %s128 = ssub.s32 %s26, %s40
      %s129 = sor.u32 %s127, %s128
      %p130 = scmp.eq.s32.totalorder %s129, 0
      %s132 = sadd.s32 %s131, 1
      %s133 = scalar_select %p130, %s131, %s132
      %p136 = pneg %p130
      %p137 = scmp.eq.s32.totalorder %s18, 11
      %p138 = por %p136, %p137
      %p139 = scmp.ne.s32.totalorder %s131, %s134
      %p140 = scmp.eq.s32.totalorder %s18, 0
      %p141 = por %p139, %p140
      %p142 = scmp.ne.s32.totalorder %s131, %s134
      %p143 = scmp.eq.s32.totalorder %s23, 11
      %p144 = por %p142, %p143
      %p145 = scmp.ne.s32.totalorder %s134, %s135
      %p146 = scmp.eq.s32.totalorder %s23, 0
      %p147 = por %p145, %p146
      %p148 = scmp.ne.s32.totalorder %s134, %s135
      %p149 = scmp.eq.s32.totalorder %s24, 11
      %p150 = por %p148, %p149
      %p152 = scmp.ne.s32.totalorder %s135, %s151
      %p153 = scmp.eq.s32.totalorder %s24, 0
      %p154 = por %p152, %p153
      %p155 = scmp.le.s32.totalorder 1, %s18
      %p156 = scmp.lt.s32.totalorder %s18, 13
      %p157 = pnand %p155, %p156
      %p158 = pneg %p157
      // Predicated region
      $region9: #{tpu_custom_call.1} parent=5 // pred_check
        _
      $region10: #{tpu_custom_call.1} parent=5 // pred_check_branch
        %160 = sbr.rel (%p157) target = $region12
      $region11: #{tpu_custom_call.1} parent=5 // pred_region
        %s161 = ssub.s32 %s18, 1
      $region12: #{tpu_custom_call.1} parent=5 // pred_fallthru
        _
      %p162 = scmp.lt.s32.totalorder %s18, 12
      // Predicated region
      $region13: #{tpu_custom_call.1} parent=5 // pred_check
        %p163 = pneg %p162
      $region14: #{tpu_custom_call.1} parent=5 // pred_check_branch
        %165 = sbr.rel (%p163) target = $region16
      $region15: #{tpu_custom_call.1} parent=5 // pred_region
        // Predicated region
        $region17: #{tpu_custom_call.1} parent=15 // pred_check
          %p166 = pneg %p59
        $region18: #{tpu_custom_call.1} parent=15 // pred_check_branch
          %168 = sbr.rel (%p166) target = $region20
        $region19: #{tpu_custom_call.1} parent=15 // pred_region
          %s169 = sand.u32 %s49, 1
          %s170 = scalar_lea.sflag [#allocation4], %s169
          %s171 = sand.u32 %s49, 1
          %s172 = smul.addr %s171, 128
          %s173 = scalar_lea.vmem [#allocation3], %s172
          %s174 = smul.u32 16, %s25
          %s176 = ssub.s32 2048, 2048
          %177 = vsyncadd %s170, %s176
          %s178 = sadd.s32 %s27, %s174
          %s179 = smul.addr %s178, 128
          %s180 = scalar_lea.hbm %s0, %s179
          %s181 = sshll.u32 %s173, 4
          %s182 = int_to_ptr.vmem [resolvable:$true] %s181
          %187 = dma.hbm_to_vmem [thread:$0]  %s180, 2048, %s182, %s170, 128, 128, 8
        $region20: #{tpu_custom_call.1} parent=15 // pred_fallthru
          _
        // Predicated region
        $region21: #{tpu_custom_call.1} parent=15 // pred_check
          %p188 = pneg %p87
        $region22: #{tpu_custom_call.1} parent=15 // pred_check_branch
          %190 = sbr.rel (%p188) target = $region24
        $region23: #{tpu_custom_call.1} parent=15 // pred_region
          %s191 = sand.u32 %s77, 1
          %s192 = scalar_lea.sflag [#allocation7], %s191
          %s193 = sand.u32 %s77, 1
          %s194 = smul.addr %s193, 64
          %s195 = scalar_lea.vmem [#allocation6], %s194
          %s196 = smul.u32 16, %s27
          %s198 = ssub.s32 1024, 1024
          %199 = vsyncadd %s192, %s198
          %s200 = smul.addr %s196, 3
          %s201 = sadd.s32 %s26, %s200
          %s202 = smul.addr %s201, 64
          %s203 = scalar_lea.hbm %s1, %s202
          %s204 = sshll.u32 %s195, 4
          %s205 = int_to_ptr.vmem [resolvable:$true] %s204
          %210 = dma.hbm_to_vmem [thread:$0]  %s203, 1024, %s205, %s192, 192, 64, 4
        $region24: #{tpu_custom_call.1} parent=15 // pred_fallthru
          _
        // Predicated region
        $region25: #{tpu_custom_call.1} parent=15 // pred_check
          %p211 = pneg %p113
        $region26: #{tpu_custom_call.1} parent=15 // pred_check_branch
          %213 = sbr.rel (%p211) target = $region28
        $region27: #{tpu_custom_call.1} parent=15 // pred_region
          %p214 = scmp.lt.s32.totalorder %s26, 2
          %s215 = scalar_select %p214, %s26, 2
          %s216 = scalar_lea.vmem %s2, %s215
        $region28: #{tpu_custom_call.1} parent=15 // pred_fallthru
          _
      $region16: #{tpu_custom_call.1} parent=5 // pred_fallthru
        _
      %p217 = scmp.le.s32.totalorder 1, %s18
      %p218 = scmp.lt.s32.totalorder %s18, 13
      %p219 = pnand %p217, %p218
      %p220 = pneg %p219
      // Predicated region
      $region29: #{tpu_custom_call.1} parent=5 // pred_check
        _
      $region30: #{tpu_custom_call.1} parent=5 // pred_check_branch
        %222 = sbr.rel (%p219) target = $region32
      $region31: #{tpu_custom_call.1} parent=5 // pred_region
        %s223 = ssub.s32 %s18, 1
        %s224 = sand.u32 %s52, 1
        %s225 = scalar_lea.sflag [#allocation4], %s224
        %s226 = sand.u32 %s52, 1
        %s227 = smul.addr %s226, 128
        %s228 = scalar_lea.vmem [#allocation3], %s227
        // Predicated region
        $region33: #{tpu_custom_call.1} parent=31 // pred_check
          %p229 = pneg %p65
        $region34: #{tpu_custom_call.1} parent=31 // pred_check_branch
          %231 = sbr.rel (%p229) target = $region36
        $region35: #{tpu_custom_call.1} parent=31 // pred_region
          %232 = dma.done %s225, 2048
        $region36: #{tpu_custom_call.1} parent=31 // pred_fallthru
          _
        %s233 = sand.u32 %s80, 1
        %s234 = scalar_lea.sflag [#allocation7], %s233
        %s235 = sand.u32 %s80, 1
        %s236 = smul.addr %s235, 64
        %s237 = scalar_lea.vmem [#allocation6], %s236
        // Predicated region
        $region37: #{tpu_custom_call.1} parent=31 // pred_check
          %p238 = pneg %p93
        $region38: #{tpu_custom_call.1} parent=31 // pred_check_branch
          %240 = sbr.rel (%p238) target = $region40
        $region39: #{tpu_custom_call.1} parent=31 // pred_region
          %241 = dma.done %s234, 1024
        $region40: #{tpu_custom_call.1} parent=31 // pred_fallthru
          _
        %s242 = sand.u32 %s52, 1
        %s243 = scalar_lea.sflag [#allocation4], %s242
        %s244 = sand.u32 %s52, 1
        %s245 = smul.addr %s244, 128
        %s246 = scalar_lea.vmem [#allocation3], %s245
        %p247 = pneg %p65
        %p248 = pneg %p62
        %s249 = sand.u32 %s80, 1
        %s250 = scalar_lea.sflag [#allocation7], %s249
        %s251 = sand.u32 %s80, 1
        %s252 = smul.addr %s251, 64
        %s253 = scalar_lea.vmem [#allocation6], %s252
        %p254 = pneg %p93
        %p255 = pneg %p90
        %p256 = scmp.lt.s32.totalorder %s29, 2
        %s257 = scalar_select %p256, %s29, 2
        %s258 = scalar_lea.vmem %s2, %s257
        %p259 = pneg %p119
        %p260 = pneg %p116
        %p261 = pneg %p147
        %p262 = pneg %p144
        %s263 = sand.u32 %s134, 1
        %s264 = scalar_lea.sflag [#allocation5], %s263
        %s265 = sand.u32 %s134, 1
        %s266 = smul.addr %s265, 64
        %s267 = scalar_lea.vmem [#allocation8], %s266
        %s268 = smul.u32 16, %s28
        %s269 = smul.u32 16, %s30
        %p270 = scmp.lt.s32.totalorder %s29, 2
        %s271 = scalar_select %p270, %s29, 2
        %s272 = scalar_lea.vmem %s2, %s271
        %s273 = smul.u32 16, %s28
        %p275 = scmp.eq.s32.totalorder %s30, 0
        // Predicated region
        $region41: #{tpu_custom_call.1} parent=31 // pred_check
          %p276 = pneg %p275
        $region42: #{tpu_custom_call.1} parent=31 // pred_check_branch
          %278 = sbr.rel (%p276) target = $region44
        $region43: #{tpu_custom_call.1} parent=31 // pred_region
          %279 = vst [vmem:[#allocation2] sm:$0xff] 0.0
          %280 = vst [vmem:[#allocation2 + $0x8] sm:$0xff] 0.0
          %281 = vst [vmem:[#allocation2 + $0x10] sm:$0xff] 0.0
          %282 = vst [vmem:[#allocation2 + $0x18] sm:$0xff] 0.0
          %283 = vst [vmem:[#allocation2 + $0x20] sm:$0xff] 0.0
          %284 = vst [vmem:[#allocation2 + $0x28] sm:$0xff] 0.0
          %285 = vst [vmem:[#allocation2 + $0x30] sm:$0xff] 0.0
          %286 = vst [vmem:[#allocation2 + $0x38] sm:$0xff] 0.0
          %287 = vst [vmem:[#allocation2 + $0x40] sm:$0xff] 0.0
          %288 = vst [vmem:[#allocation2 + $0x48] sm:$0xff] 0.0
          %289 = vst [vmem:[#allocation2 + $0x50] sm:$0xff] 0.0
          %290 = vst [vmem:[#allocation2 + $0x58] sm:$0xff] 0.0
          %291 = vst [vmem:[#allocation2 + $0x60] sm:$0xff] 0.0
          %292 = vst [vmem:[#allocation2 + $0x68] sm:$0xff] 0.0
          %293 = vst [vmem:[#allocation2 + $0x70] sm:$0xff] 0.0
          %294 = vst [vmem:[#allocation2 + $0x78] sm:$0xff] 0.0
        $region44: #{tpu_custom_call.1} parent=31 // pred_fallthru
          _
        %v295 = vld [vmem:[#allocation2] sm:$0xff]
        %v296 = vld [vmem:[#allocation2 + $0x8] sm:$0xff]
        %v297 = vld [vmem:[#allocation2 + $0x10] sm:$0xff]
        %v298 = vld [vmem:[#allocation2 + $0x18] sm:$0xff]
        %v299 = vld [vmem:[#allocation2 + $0x20] sm:$0xff]
        %v300 = vld [vmem:[#allocation2 + $0x28] sm:$0xff]
        %v301 = vld [vmem:[#allocation2 + $0x30] sm:$0xff]
        %v302 = vld [vmem:[#allocation2 + $0x38] sm:$0xff]
        %v303 = vld [vmem:[#allocation2 + $0x40] sm:$0xff]
        %v304 = vld [vmem:[#allocation2 + $0x48] sm:$0xff]
        %v305 = vld [vmem:[#allocation2 + $0x50] sm:$0xff]
        %v306 = vld [vmem:[#allocation2 + $0x58] sm:$0xff]
        %v307 = vld [vmem:[#allocation2 + $0x60] sm:$0xff]
        %v308 = vld [vmem:[#allocation2 + $0x68] sm:$0xff]
        %v309 = vld [vmem:[#allocation2 + $0x70] sm:$0xff]
        %v310 = vld [vmem:[#allocation2 + $0x78] sm:$0xff]
        %v311 = vld [vmem:[%s228] sm:$0xff]
        %v312 = vld [vmem:[%s228 + $0x8] sm:$0xff]
        %v313 = vld [vmem:[%s228 + $0x10] sm:$0xff]
        %v314 = vld [vmem:[%s228 + $0x18] sm:$0xff]
        %v315 = vld [vmem:[%s228 + $0x20] sm:$0xff]
        %v316 = vld [vmem:[%s228 + $0x28] sm:$0xff]
        %v317 = vld [vmem:[%s228 + $0x30] sm:$0xff]
        %v318 = vld [vmem:[%s228 + $0x38] sm:$0xff]
        %v319 = vld [vmem:[%s228 + $0x40] sm:$0xff]
        %v320 = vld [vmem:[%s228 + $0x48] sm:$0xff]
        %v321 = vld [vmem:[%s228 + $0x50] sm:$0xff]
        %v322 = vld [vmem:[%s228 + $0x58] sm:$0xff]
        %v323 = vld [vmem:[%s228 + $0x60] sm:$0xff]
        %v324 = vld [vmem:[%s228 + $0x68] sm:$0xff]
        %v325 = vld [vmem:[%s228 + $0x70] sm:$0xff]
        %v326 = vld [vmem:[%s228 + $0x78] sm:$0xff]
        %v327 = vpack.c.bf16 %v312, %v311
        %v328 = vpack.c.bf16 %v314, %v313
        %v329 = vpack.c.bf16 %v316, %v315
        %v330 = vpack.c.bf16 %v318, %v317
        %v331 = vpack.c.bf16 %v320, %v319
        %v332 = vpack.c.bf16 %v322, %v321
        %v333 = vpack.c.bf16 %v324, %v323
        %v334 = vpack.c.bf16 %v326, %v325
        %v335 = vld [vmem:[%s237] sm:$0xf]
        %v336 = vld [vmem:[%s237 + $0x4] sm:$0xf]
        %v337 = vld [vmem:[%s237 + $0x8] sm:$0xf]
        %v338 = vld [vmem:[%s237 + $0xc] sm:$0xf]
        %v339 = vld [vmem:[%s237 + $0x10] sm:$0xf]
        %v340 = vld [vmem:[%s237 + $0x14] sm:$0xf]
        %v341 = vld [vmem:[%s237 + $0x18] sm:$0xf]
        %v342 = vld [vmem:[%s237 + $0x1c] sm:$0xf]
        %v343 = vld [vmem:[%s237 + $0x20] sm:$0xf]
        %v344 = vld [vmem:[%s237 + $0x24] sm:$0xf]
        %v345 = vld [vmem:[%s237 + $0x28] sm:$0xf]
        %v346 = vld [vmem:[%s237 + $0x2c] sm:$0xf]
        %v347 = vld [vmem:[%s237 + $0x30] sm:$0xf]
        %v348 = vld [vmem:[%s237 + $0x34] sm:$0xf]
        %v349 = vld [vmem:[%s237 + $0x38] sm:$0xf]
        %v350 = vld [vmem:[%s237 + $0x3c] sm:$0xf]
        %v367 = vunpack.c.l.b16 %v335
        %v368 = vunpack.c.l.b16 %v336
        %v369 = vunpack.c.l.b16 %v337
        %v370 = vunpack.c.l.b16 %v338
        %v371 = vunpack.c.l.b16 %v339
        %v372 = vunpack.c.l.b16 %v340
        %v373 = vunpack.c.l.b16 %v341
        %v374 = vunpack.c.l.b16 %v342
        %v375 = vunpack.c.l.b16 %v343
        %v376 = vunpack.c.l.b16 %v344
        %v377 = vunpack.c.l.b16 %v345
        %v378 = vunpack.c.l.b16 %v346
        %v379 = vunpack.c.l.b16 %v347
        %v380 = vunpack.c.l.b16 %v348
        %v381 = vunpack.c.l.b16 %v349
        %v382 = vunpack.c.l.b16 %v350
        %v383 = vpack.c.b16 %v368, %v367
        %v384 = vpack.c.b16 %v370, %v369
        %v385 = vpack.c.b16 %v372, %v371
        %v386 = vpack.c.b16 %v374, %v373
        %v387 = vpack.c.b16 %v376, %v375
        %v388 = vpack.c.b16 %v378, %v377
        %v389 = vpack.c.b16 %v380, %v379
        %v390 = vpack.c.b16 %v382, %v381
        %399 = vmatprep.subr.bf16.mxu0 0
        %400 = vmatpush1.bf16.msra.mxu0 %v383
        %401 = vmatprep.subr.bf16.mxu0 0
        %402 = vmatpush1.bf16.msra.mxu0 %v384
        %403 = vmatprep.subr.bf16.mxu0 0
        %404 = vmatpush1.bf16.msra.mxu0 %v385
        %405 = vmatprep.subr.bf16.mxu0 0
        %406 = vmatpush1.bf16.msra.mxu0 %v386
        %407 = vmatprep.subr.bf16.mxu0 0
        %408 = vmatpush1.bf16.msra.mxu0 %v387
        %409 = vmatprep.subr.bf16.mxu0 0
        %410 = vmatpush1.bf16.msra.mxu0 %v388
        %411 = vmatprep.subr.bf16.mxu0 0
        %412 = vmatpush1.bf16.msra.mxu0 %v389
        %413 = vmatprep.subr.bf16.mxu0 0
        %414 = vmatpush1.bf16.msra.mxu0 %v390
        %415 = vmatprep.subr.bf16.mxu0 0
        %416 = vmatpush1.bf16.msra.mxu0 0
        %417 = vmatprep.subr.bf16.mxu0 0
        %418 = vmatpush1.bf16.msra.mxu0 0
        %419 = vmatprep.subr.bf16.mxu0 0
        %420 = vmatpush1.bf16.msra.mxu0 0
        %421 = vmatprep.subr.bf16.mxu0 0
        %422 = vmatpush1.bf16.msra.mxu0 0
        %423 = vmatprep.subr.bf16.mxu0 0
        %424 = vmatpush1.bf16.msra.mxu0 0
        %425 = vmatprep.subr.bf16.mxu0 0
        %426 = vmatpush1.bf16.msra.mxu0 0
        %427 = vmatprep.subr.bf16.mxu0 0
        %428 = vmatpush1.bf16.msra.mxu0 0
        %429 = vmatprep.subr.bf16.mxu0 0
        %430 = vmatpush1.bf16.msra.mxu0 0
        %431 = vmatprep.mubr.bf16.mxu0 0
        %432 = vmatmul.mubr.bf16.gmra.mrb[0].mxu0 %v327
        %v433 = vpop.f32.mrb[0].mxu0
        %v434 = vadd.f32 0.0, %v433
        %v435 = vpop.f32.mrb[0].mxu0
        %v436 = vpop.f32.mrb[0].mxu0
        %v437 = vadd.f32 0.0, %v436
        %v438 = vpop.f32.mrb[0].mxu0
        %439 = vmatprep.mubr.bf16.mxu0 0
        %440 = vmatmul.mubr.bf16.gmra.mrb[0].mxu0 %v328
        %v441 = vpop.f32.mrb[0].mxu0
        %v442 = vadd.f32 0.0, %v441
        %v443 = vpop.f32.mrb[0].mxu0
        %v444 = vpop.f32.mrb[0].mxu0
        %v445 = vadd.f32 0.0, %v444
        %v446 = vpop.f32.mrb[0].mxu0
        %447 = vmatprep.mubr.bf16.mxu0 0
        %448 = vmatmul.mubr.bf16.gmra.mrb[0].mxu0 %v329
        %v449 = vpop.f32.mrb[0].mxu0
        %v450 = vadd.f32 0.0, %v449
        %v451 = vpop.f32.mrb[0].mxu0
        %v452 = vpop.f32.mrb[0].mxu0
        %v453 = vadd.f32 0.0, %v452
        %v454 = vpop.f32.mrb[0].mxu0
        %455 = vmatprep.mubr.bf16.mxu0 0
        %456 = vmatmul.mubr.bf16.gmra.mrb[0].mxu0 %v330
        %v457 = vpop.f32.mrb[0].mxu0
        %v458 = vadd.f32 0.0, %v457
        %v459 = vpop.f32.mrb[0].mxu0
        %v460 = vpop.f32.mrb[0].mxu0
        %v461 = vadd.f32 0.0, %v460
        %v462 = vpop.f32.mrb[0].mxu0
        %463 = vmatprep.mubr.bf16.mxu0 0
        %464 = vmatmul.mubr.bf16.gmra.mrb[0].mxu0 %v331
        %v465 = vpop.f32.mrb[0].mxu0
        %v466 = vadd.f32 0.0, %v465
        %v467 = vpop.f32.mrb[0].mxu0
        %v468 = vpop.f32.mrb[0].mxu0
        %v469 = vadd.f32 0.0, %v468
        %v470 = vpop.f32.mrb[0].mxu0
        %471 = vmatprep.mubr.bf16.mxu0 0
        %472 = vmatmul.mubr.bf16.gmra.mrb[0].mxu0 %v332
        %v473 = vpop.f32.mrb[0].mxu0
        %v474 = vadd.f32 0.0, %v473
        %v475 = vpop.f32.mrb[0].mxu0
        %v476 = vpop.f32.mrb[0].mxu0
        %v477 = vadd.f32 0.0, %v476
        %v478 = vpop.f32.mrb[0].mxu0
        %479 = vmatprep.mubr.bf16.mxu0 0
        %480 = vmatmul.mubr.bf16.gmra.mrb[0].mxu0 %v333
        %v481 = vpop.f32.mrb[0].mxu0
        %v482 = vadd.f32 0.0, %v481
        %v483 = vpop.f32.mrb[0].mxu0
        %v484 = vpop.f32.mrb[0].mxu0
        %v485 = vadd.f32 0.0, %v484
        %v486 = vpop.f32.mrb[0].mxu0
        %487 = vmatprep.mubr.bf16.mxu0 0
        %488 = vmatmul.mubr.bf16.gmra.mrb[0].mxu0 %v334
        %v489 = vpop.f32.mrb[0].mxu0
        %v490 = vadd.f32 0.0, %v489
        %v491 = vpop.f32.mrb[0].mxu0
        %v492 = vpop.f32.mrb[0].mxu0
        %v493 = vadd.f32 0.0, %v492
        %v494 = vpop.f32.mrb[0].mxu0
        %495 = vdwg.mxu0
        %v496 = vadd.f32 %v295, %v434
        %v497 = vadd.f32 %v296, %v437
        %v498 = vadd.f32 %v297, %v442
        %v499 = vadd.f32 %v298, %v445
        %v500 = vadd.f32 %v299, %v450
        %v501 = vadd.f32 %v300, %v453
        %v502 = vadd.f32 %v301, %v458
        %v503 = vadd.f32 %v302, %v461
        %v504 = vadd.f32 %v303, %v466
        %v505 = vadd.f32 %v304, %v469
        %v506 = vadd.f32 %v305, %v474
        %v507 = vadd.f32 %v306, %v477
        %v508 = vadd.f32 %v307, %v482
        %v509 = vadd.f32 %v308, %v485
        %v510 = vadd.f32 %v309, %v490
        %v511 = vadd.f32 %v310, %v493
        %512 = vst [vmem:[#allocation2] sm:$0xff] %v496
        %513 = vst [vmem:[#allocation2 + $0x8] sm:$0xff] %v497
        %514 = vst [vmem:[#allocation2 + $0x10] sm:$0xff] %v498
        %515 = vst [vmem:[#allocation2 + $0x18] sm:$0xff] %v499
        %516 = vst [vmem:[#allocation2 + $0x20] sm:$0xff] %v500
        %517 = vst [vmem:[#allocation2 + $0x28] sm:$0xff] %v501
        %518 = vst [vmem:[#allocation2 + $0x30] sm:$0xff] %v502
        %519 = vst [vmem:[#allocation2 + $0x38] sm:$0xff] %v503
        %520 = vst [vmem:[#allocation2 + $0x40] sm:$0xff] %v504
        %521 = vst [vmem:[#allocation2 + $0x48] sm:$0xff] %v505
        %522 = vst [vmem:[#allocation2 + $0x50] sm:$0xff] %v506
        %523 = vst [vmem:[#allocation2 + $0x58] sm:$0xff] %v507
        %524 = vst [vmem:[#allocation2 + $0x60] sm:$0xff] %v508
        %525 = vst [vmem:[#allocation2 + $0x68] sm:$0xff] %v509
        %526 = vst [vmem:[#allocation2 + $0x70] sm:$0xff] %v510
        %527 = vst [vmem:[#allocation2 + $0x78] sm:$0xff] %v511
        // Predicated region
        $region45: #{tpu_custom_call.1} parent=31 // pred_check
          %p528 = pneg %p275
        $region46: #{tpu_custom_call.1} parent=31 // pred_check_branch
          %530 = sbr.rel (%p528) target = $region48
        $region47: #{tpu_custom_call.1} parent=31 // pred_region
          %v531 = vld [vmem:[#allocation2] sm:$0xff]
          %v532 = vld [vmem:[#allocation2 + $0x8] sm:$0xff]
          %v533 = vld [vmem:[#allocation2 + $0x10] sm:$0xff]
          %v534 = vld [vmem:[#allocation2 + $0x18] sm:$0xff]
          %v535 = vld [vmem:[#allocation2 + $0x20] sm:$0xff]
          %v536 = vld [vmem:[#allocation2 + $0x28] sm:$0xff]
          %v537 = vld [vmem:[#allocation2 + $0x30] sm:$0xff]
          %v538 = vld [vmem:[#allocation2 + $0x38] sm:$0xff]
          %v539 = vld [vmem:[#allocation2 + $0x40] sm:$0xff]
          %v540 = vld [vmem:[#allocation2 + $0x48] sm:$0xff]
          %v541 = vld [vmem:[#allocation2 + $0x50] sm:$0xff]
          %v542 = vld [vmem:[#allocation2 + $0x58] sm:$0xff]
          %v543 = vld [vmem:[#allocation2 + $0x60] sm:$0xff]
          %v544 = vld [vmem:[#allocation2 + $0x68] sm:$0xff]
          %v545 = vld [vmem:[#allocation2 + $0x70] sm:$0xff]
          %v546 = vld [vmem:[#allocation2 + $0x78] sm:$0xff]
          %v547 = vld [vmem:[%s272] sm:$0x1]
          %v549 = vlaneseq
          %v550 = vshrl.u32 %v549, 7
          %v551 = vsub.s32 0, %v550
          %v552 = vrot.slane %v547, %v551
          %v554 = vadd.f32 %v531, %v552
          %v555 = vadd.f32 %v532, %v552
          %v556 = vadd.f32 %v533, %v552
          %v557 = vadd.f32 %v534, %v552
          %v558 = vadd.f32 %v535, %v552
          %v559 = vadd.f32 %v536, %v552
          %v560 = vadd.f32 %v537, %v552
          %v561 = vadd.f32 %v538, %v552
          %v562 = vadd.f32 %v539, %v552
          %v563 = vadd.f32 %v540, %v552
          %v564 = vadd.f32 %v541, %v552
          %v565 = vadd.f32 %v542, %v552
          %v566 = vadd.f32 %v543, %v552
          %v567 = vadd.f32 %v544, %v552
          %v568 = vadd.f32 %v545, %v552
          %v569 = vadd.f32 %v546, %v552
          %v570 = vpack.c.bf16 %v555, %v554
          %v571 = vpack.c.bf16 %v557, %v556
          %v572 = vpack.c.bf16 %v559, %v558
          %v573 = vpack.c.bf16 %v561, %v560
          %v574 = vpack.c.bf16 %v563, %v562
          %v575 = vpack.c.bf16 %v565, %v564
          %v576 = vpack.c.bf16 %v567, %v566
          %v577 = vpack.c.bf16 %v569, %v568
          %v586 = vunpack.c.l.b16 %v570
          %v587 = vunpack.c.h.b16 %v570
          %v588 = vunpack.c.l.b16 %v571
          %v589 = vunpack.c.h.b16 %v571
          %v590 = vunpack.c.l.b16 %v572
          %v591 = vunpack.c.h.b16 %v572
          %v592 = vunpack.c.l.b16 %v573
          %v593 = vunpack.c.h.b16 %v573
          %v594 = vunpack.c.l.b16 %v574
          %v595 = vunpack.c.h.b16 %v574
          %v596 = vunpack.c.l.b16 %v575
          %v597 = vunpack.c.h.b16 %v575
          %v598 = vunpack.c.l.b16 %v576
          %v599 = vunpack.c.h.b16 %v576
          %v600 = vunpack.c.l.b16 %v577
          %v601 = vunpack.c.h.b16 %v577
          %v602 = vpack.c.b16 %v586, %v586
          %v603 = vpack.c.b16 %v587, %v587
          %v604 = vpack.c.b16 %v588, %v588
          %v605 = vpack.c.b16 %v589, %v589
          %v606 = vpack.c.b16 %v590, %v590
          %v607 = vpack.c.b16 %v591, %v591
          %v608 = vpack.c.b16 %v592, %v592
          %v609 = vpack.c.b16 %v593, %v593
          %v610 = vpack.c.b16 %v594, %v594
          %v611 = vpack.c.b16 %v595, %v595
          %v612 = vpack.c.b16 %v596, %v596
          %v613 = vpack.c.b16 %v597, %v597
          %v614 = vpack.c.b16 %v598, %v598
          %v615 = vpack.c.b16 %v599, %v599
          %v616 = vpack.c.b16 %v600, %v600
          %v617 = vpack.c.b16 %v601, %v601
          %634 = vst [vmem:[%s267] sm:$0xf] %v602
          %635 = vst [vmem:[%s267 + $0x4] sm:$0xf] %v603
          %636 = vst [vmem:[%s267 + $0x8] sm:$0xf] %v604
          %637 = vst [vmem:[%s267 + $0xc] sm:$0xf] %v605
          %638 = vst [vmem:[%s267 + $0x10] sm:$0xf] %v606
          %639 = vst [vmem:[%s267 + $0x14] sm:$0xf] %v607
          %640 = vst [vmem:[%s267 + $0x18] sm:$0xf] %v608
          %641 = vst [vmem:[%s267 + $0x1c] sm:$0xf] %v609
          %642 = vst [vmem:[%s267 + $0x20] sm:$0xf] %v610
          %643 = vst [vmem:[%s267 + $0x24] sm:$0xf] %v611
          %644 = vst [vmem:[%s267 + $0x28] sm:$0xf] %v612
          %645 = vst [vmem:[%s267 + $0x2c] sm:$0xf] %v613
          %646 = vst [vmem:[%s267 + $0x30] sm:$0xf] %v614
          %647 = vst [vmem:[%s267 + $0x34] sm:$0xf] %v615
          %648 = vst [vmem:[%s267 + $0x38] sm:$0xf] %v616
          %649 = vst [vmem:[%s267 + $0x3c] sm:$0xf] %v617
        $region48: #{tpu_custom_call.1} parent=31 // pred_fallthru
          _
        %s650 = sand.u32 %s134, 1
        %s651 = scalar_lea.sflag [#allocation5], %s650
        %s652 = sand.u32 %s134, 1
        %s653 = smul.addr %s652, 64
        %s654 = scalar_lea.vmem [#allocation8], %s653
        // Predicated region
        $region49: #{tpu_custom_call.1} parent=31 // pred_check
          %p655 = pneg %p144
        $region50: #{tpu_custom_call.1} parent=31 // pred_check_branch
          %657 = sbr.rel (%p655) target = $region52
        $region51: #{tpu_custom_call.1} parent=31 // pred_region
          %s658 = smul.u32 16, %s28
          %s660 = ssub.s32 1024, 1024
          %661 = vsyncadd %s651, %s660
          %s662 = smul.addr %s658, 3
          %s663 = sadd.s32 %s29, %s662
          %s664 = smul.addr %s663, 64
          %s665 = scalar_lea.hbm %s3, %s664
          %s666 = sshll.u32 %s654, 4
          %s667 = int_to_ptr.vmem [resolvable:$true] %s666
          %672 = dma.vmem_to_hbm [thread:$0]  %s667, 1024, %s665, %s651, 64, 192, 4
        $region52: #{tpu_custom_call.1} parent=31 // pred_fallthru
          _
      $region32: #{tpu_custom_call.1} parent=5 // pred_fallthru
        _
      %p673 = scmp.le.s32.totalorder 2, %s18
      // Predicated region
      $region53: #{tpu_custom_call.1} parent=5 // pred_check
        %p674 = pneg %p673
      $region54: #{tpu_custom_call.1} parent=5 // pred_check_branch
        %676 = sbr.rel (%p674) target = $region56
      $region55: #{tpu_custom_call.1} parent=5 // pred_region
        %s677 = ssub.s32 %s18, 2
        // Predicated region
        $region57: #{tpu_custom_call.1} parent=55 // pred_check
          %p678 = pneg %p150
        $region58: #{tpu_custom_call.1} parent=55 // pred_check_branch
          %680 = sbr.rel (%p678) target = $region60
        $region59: #{tpu_custom_call.1} parent=55 // pred_region
          %s681 = sand.u32 %s135, 1
          %s682 = scalar_lea.sflag [#allocation5], %s681
          %s683 = sand.u32 %s135, 1
          %s684 = smul.addr %s683, 64
          %s685 = scalar_lea.vmem [#allocation8], %s684
          %686 = dma.done %s682, 1024
        $region60: #{tpu_custom_call.1} parent=55 // pred_fallthru
          _
      $region56: #{tpu_custom_call.1} parent=5 // pred_fallthru
        _
    $region6: #{tpu_custom_call.1} parent=1 // loop_footer
      %s22 = sadd.s32 1, %s18
    $region7: #{tpu_custom_call.1} parent=1 // loop_footer_branch
      %17 = sbr.rel target = $region3
    $region8: #{tpu_custom_call.1} parent=1 // loop_exit
      _
    %687 = vsyncpa [#allocation4], 1
    %s688 = scalar_lea.sflag [#allocation4], 1
    %689 = vsyncpa %s688, 1
    %690 = vsyncpa [#allocation7], 1
    %s691 = scalar_lea.sflag [#allocation7], 1
    %692 = vsyncpa %s691, 1
    %693 = vsyncpa [#allocation5], 1
    %s694 = scalar_lea.sflag [#allocation5], 1
    %695 = vsyncpa %s694, 1

</llo_original>
